<compile_context>
chip_gen: v5e
topology: v5e:2x2
jax: 0.10.0
libtpu: 0.0.40
codegen_flags: <defaults>
</compile_context>

<pallas_src>
import functools
import math

import jax
import jax.numpy as jnp
import numpy as np
from jax.experimental import pallas as pl
from jax.experimental.pallas import tpu as pltpu


def _round_up(a, b):
    return ((a + b - 1) // b) * b


def _sublanes(dtype):
    # Rows packed per vreg: 8 for 4-byte, 16 for 2-byte, 32 for 1-byte dtypes.
    return max(8, 32 // jnp.dtype(dtype).itemsize)


def _rmsnorm_kernel(x_ref, w_ref, o_ref, *, eps):
    # x_ref: (TM, D) input dtype; w_ref: (1, D) weight dtype; o_ref: (TM, D).
    x_f32 = x_ref[...].astype(jnp.float32)                   # x.float()
    ms = jnp.mean(x_f32 * x_f32, axis=-1, keepdims=True)     # (TM, 1)
    inv = jax.lax.rsqrt(ms + eps)                             # EUP rsqrt
    normed = (x_f32 * inv).astype(x_ref.dtype)               # .type_as(x)
    o_ref[...] = (w_ref[...] * normed).astype(o_ref.dtype)   # weight * (...)


def _pick_block_tokens(T, D, in_dtype, out_dtype):
    """Pick a token-tile size so the x tile is ~2 MiB, sublane-aligned."""
    in_bytes = jnp.dtype(in_dtype).itemsize
    sublane = max(_sublanes(in_dtype), _sublanes(out_dtype))
    target_tile_bytes = 2 * 1024 * 1024  # ~2 MiB x tile amortizes step overhead
    row_bytes = max(1, D * in_bytes)
    tm = (target_tile_bytes // row_bytes) // sublane * sublane
    tm = max(sublane, min(tm, 1024))  # diminishing returns past ~2-4 MiB
    # Keep the grid at >= ~8 steps when T is large enough (feeds both v7x TCs
    # and keeps DMA double-buffering pipelined), but never shrink the tile
    # below 256 rows just for step count.
    steps_cap = _round_up(max(1, math.ceil(T / 8)), sublane)
    tm = min(tm, max(steps_cap, 256))
    # Never larger than one (sublane-rounded) pass over the whole input.
    tm = min(tm, _round_up(T, sublane))
    return tm


def rmsnorm_pallas(x, weight, eps, *, out_dtype=None):
    """Pallas RMSNorm over the last dim of x.  weight has shape (D,).

    out_dtype=None follows PyTorch promotion (result_type(weight, x)); pass
    e.g. jnp.bfloat16 explicitly to trade strict promotion for ~1/3 less HBM
    write traffic on the bf16 activation path.
    """
    orig_shape = x.shape
    D = orig_shape[-1]
    T = math.prod(orig_shape[:-1]) if len(orig_shape) > 1 else 1
    x_flat = x.reshape(T, D)

    if out_dtype is None:
        out_dtype = jnp.result_type(weight.dtype, x.dtype)

    tm = _pick_block_tokens(T, D, x.dtype, out_dtype)
    grid = (pl.cdiv(T, tm),)
    w2d = weight.reshape(1, D)

    out = pl.pallas_call(
        functools.partial(_rmsnorm_kernel, eps=float(eps)),
        out_shape=jax.ShapeDtypeStruct((T, D), out_dtype),
        grid=grid,
        in_specs=[
            # x tile: full rows so the D-reduction never crosses a block.
            pl.BlockSpec((tm, D), lambda i: (i, 0)),
            # weight row: constant block index -> stays resident across steps.
            pl.BlockSpec((1, D), lambda i: (0, 0)),
        ],
        out_specs=pl.BlockSpec((tm, D), lambda i: (i, 0)),
        compiler_params=pltpu.CompilerParams(
            # Tiles are independent -> shard across v7x's 2 TensorCores;
            # harmless (near-zero impact) on single-TC v5e/v6e.
            dimension_semantics=("parallel",)),
    )(x_flat, w2d)

    return out.reshape(orig_shape[:-1] + (D,))


def rmsnorm_ref(x, weight, eps):
    """Pure-JAX reference mirroring the PyTorch forward."""
    x_f32 = x.astype(jnp.float32)
    inv = jax.lax.rsqrt(jnp.mean(x_f32 * x_f32, axis=-1, keepdims=True) + eps)
    return weight * (x_f32 * inv).astype(x.dtype)


if __name__ == "__main__":
    eps = 1e-5
    B, S, D = 2, 64, 512  # small, lane-dense (D % 128 == 0), T = 128

    key = jax.random.PRNGKey(0)
    kx, kw = jax.random.split(key)
    x = jax.random.normal(kx, (B, S, D), dtype=jnp.float32)
    # Module inits weight to ones; use non-trivial values so the multiply is tested.
    weight = 1.0 + 0.1 * jax.random.normal(kw, (D,), dtype=jnp.float32)

    # f32 path.
    y = jax.block_until_ready(rmsnorm_pallas(x, weight, eps))
    np.testing.assert_allclose(np.asarray(y), np.asarray(rmsnorm_ref(x, weight, eps)),
                               rtol=1e-5, atol=1e-5)

    # bf16 activation path (f32 internal math, cast back, then f32 weight multiply;
    # output dtype follows PyTorch promotion -> f32).
    x_bf16 = x.astype(jnp.bfloat16)
    y_bf = jax.block_until_ready(rmsnorm_pallas(x_bf16, weight, eps))
    np.testing.assert_allclose(np.asarray(y_bf, dtype=np.float32),
                               np.asarray(rmsnorm_ref(x_bf16, weight, eps),
                                          dtype=np.float32),
                               rtol=2e-2, atol=2e-2)

    # Ragged-tail path: T not a multiple of the token tile, multi-step grid.
    x_odd = jax.random.normal(kx, (2, 300, D), dtype=jnp.float32)  # T = 600
    y_odd = jax.block_until_ready(rmsnorm_pallas(x_odd, weight, eps))
    np.testing.assert_allclose(np.asarray(y_odd),
                               np.asarray(rmsnorm_ref(x_odd, weight, eps)),
                               rtol=1e-5, atol=1e-5)

    # Tiny-T path (single partial block).
    x_tiny = jax.random.normal(kx, (3, D), dtype=jnp.bfloat16)
    y_tiny = jax.block_until_ready(rmsnorm_pallas(x_tiny, weight, eps))
    np.testing.assert_allclose(np.asarray(y_tiny, dtype=np.float32),
                               np.asarray(rmsnorm_ref(x_tiny, weight, eps),
                                          dtype=np.float32),
                               rtol=2e-2, atol=2e-2)

    print("KERNEL_OK")
</pallas_src>

<mosaic_0001>
module attributes {stable_mosaic.version = 11 : i64} {
  func.func @_rmsnorm_kernel(%arg0: i32, %arg1: memref<128x512xf32, #tpu.memory_space<vmem>>, %arg2: memref<1x512xf32, #tpu.memory_space<vmem>>, %arg3: memref<128x512xf32, #tpu.memory_space<vmem>>) attributes {dimension_semantics = [#tpu.dimension_semantics<parallel>], iteration_bounds = array<i64: 1>, scalar_prefetch = 0 : i64, scratch_operands = 0 : i64, tpu.core_type = #tpu.core_type<tc>, window_params = [{transform_indices = @transform_0, window_bounds = array<i64: 128, 512>}, {pipeline_mode = #tpu.pipeline_mode<synchronous>, transform_indices = @transform_1, window_bounds = array<i64: 1, 512>}, {transform_indices = @transform_2, window_bounds = array<i64: 128, 512>}]} {
    %c0 = arith.constant 0 : index
    %c0_0 = arith.constant 0 : index
    %0 = vector.load %arg1[%c0, %c0_0] : memref<128x512xf32, #tpu.memory_space<vmem>>, vector<128x512xf32>
    %1 = arith.mulf %0, %0 : vector<128x512xf32>
    %cst = arith.constant dense<0.000000e+00> : vector<128xf32>
    %2 = vector.multi_reduction <add>, %1, %cst [1] : vector<128x512xf32> to vector<128xf32>
    %3 = vector.shape_cast %2 : vector<128xf32> to vector<128x1xf32>
    %cst_1 = arith.constant 5.120000e+02 : f32
    %4 = vector.broadcast %cst_1 : f32 to vector<128x1xf32>
    %5 = arith.divf %3, %4 : vector<128x1xf32>
    %cst_2 = arith.constant 9.99999974E-6 : f32
    %6 = vector.broadcast %cst_2 : f32 to vector<128x1xf32>
    %7 = arith.addf %5, %6 : vector<128x1xf32>
    %8 = math.rsqrt %7 : vector<128x1xf32>
    %9 = vector.broadcast %8 : vector<128x1xf32> to vector<128x512xf32>
    %10 = arith.mulf %0, %9 : vector<128x512xf32>
    %c0_3 = arith.constant 0 : index
    %c0_4 = arith.constant 0 : index
    %11 = vector.load %arg2[%c0_3, %c0_4] : memref<1x512xf32, #tpu.memory_space<vmem>>, vector<1x512xf32>
    %12 = vector.broadcast %11 : vector<1x512xf32> to vector<128x512xf32>
    %13 = arith.mulf %12, %10 : vector<128x512xf32>
    %c0_5 = arith.constant 0 : index
    %c0_6 = arith.constant 0 : index
    %14 = vector.load %arg3[%c0_5, %c0_6] : memref<128x512xf32, #tpu.memory_space<vmem>>, vector<128x512xf32>
    tpu.vector_store %arg3[%c0_5, %c0_6], %13 {strides = array<i32>} : memref<128x512xf32, #tpu.memory_space<vmem>>, vector<128x512xf32>,
    return
  }
  func.func @transform_0(%arg0: i32) -> (i32, i32) {
    %c0_i32 = arith.constant 0 : i32
    %c0_i32_0 = arith.constant 0 : i32
    return %arg0, %c0_i32 : i32, i32
  }
  func.func @transform_1(%arg0: i32) -> (i32, i32) {
    %c0_i32 = arith.constant 0 : i32
    %c0_i32_0 = arith.constant 0 : i32
    %c0_i32_1 = arith.constant 0 : i32
    return %c0_i32, %c0_i32_0 : i32, i32
  }
  func.func @transform_2(%arg0: i32) -> (i32, i32) {
    %c0_i32 = arith.constant 0 : i32
    %c0_i32_0 = arith.constant 0 : i32
    return %arg0, %c0_i32 : i32, i32
  }
}

</mosaic_0001>

<llo_original>
// kernel: tpu_custom_call.1
$region0: #{tpu_custom_call.1}
  #allocation0 [shape = 'u32[]', space=smem, size = 0x4, offset = 0x4, fixed_abs, tag = 'smem constant byte address 0x4 - core index']
  #allocation1 [shape = 'u32[72,128]{1,0:T(1,128)}', space=vmem, size = 0x9000, scoped, tag = 'internal scratch']
  %s0 = inlined_call_operand.hbm [shape: f32[128,512], index: 0, kind: input, shape index: {}]
  %s1 = inlined_call_operand.hbm [shape: f32[1,512], index: 1, kind: input, shape index: {}]
  %s2 = inlined_call_operand.hbm [shape: f32[128,512], index: 2, kind: output, shape index: {}]
  %s3 = sld [smem:[#allocation0]]
  $region26: #{tpu_custom_call.1} parent=0
    _
  %s5 = ssub.s32 1, %s3
  %s6 = scalar_select 0, %s5, %s3
  $region1: #{tpu_custom_call.1} parent=0
    #allocation2 [shape = 'u8[262144]{0}', space=vmem, size = 0x40000, scoped, tag = 'input window, operand 0, single buffered']
    #allocation3 [shape = 's32[1]{0}', space=sflag, size = 0x4, scoped, tag = 'scoped memory for tpu_custom_call.1']
    #allocation4 [shape = 's32[1]{0}', space=sflag, size = 0x4, scoped, tag = 'scoped memory for tpu_custom_call.1']
    #allocation5 [shape = 'u8[2048]{0}', space=vmem, size = 0x800, scoped, tag = 'input window, operand 1, single buffered']
    #allocation6 [shape = 's32[1]{0}', space=sflag, size = 0x4, scoped, tag = 'scoped memory for tpu_custom_call.1']
    #allocation7 [shape = 'u8[262144]{0}', space=vmem, size = 0x40000, scoped, tag = 'output window, operand 0, single buffered']
    %7 = vsyncpa [#allocation3], 0
    %8 = vsyncpa [#allocation6], 0
    %9 = vsyncpa [#allocation4], 0
    // Predicated region
    $region2: #{tpu_custom_call.1} parent=1 // pred_check
      _
    $region3: #{tpu_custom_call.1} parent=1 // pred_check_branch
      %11 = sbr.rel (0) target = $region5
    $region4: #{tpu_custom_call.1} parent=1 // pred_region
      %13 = vsyncadd [#allocation3], 0
      %s14 = sshll.u32 %s0, 4
      %s15 = int_to_ptr.hbm [resolvable:$true] %s14
      %s16 = sshll.u32 [#allocation2], 4
      %s17 = int_to_ptr.vmem [resolvable:$true] %s16
      %22 = dma.hbm_to_vmem [thread:$0]  %s15, 8192, %s17, [#allocation3], 512, 512, 32
    $region5: #{tpu_custom_call.1} parent=1 // pred_fallthru
      _
    // Predicated region
    $region6: #{tpu_custom_call.1} parent=1 // pred_check
      _
    $region7: #{tpu_custom_call.1} parent=1 // pred_check_branch
      %24 = sbr.rel (0) target = $region9
    $region8: #{tpu_custom_call.1} parent=1 // pred_region
      %26 = vsyncadd [#allocation6], 0
      %s28 = sshll.u32 %s1, 4
      %s29 = int_to_ptr.hbm [resolvable:$true] %s28
      %s30 = sshll.u32 [#allocation5], 4
      %s31 = int_to_ptr.vmem [resolvable:$true] %s30
      %33 = dma.hbm_to_vmem [thread:$0]  %s29, 64, %s31, [#allocation6]
    $region9: #{tpu_custom_call.1} parent=1 // pred_fallthru
      _
    // Predicated region
    $region10: #{tpu_custom_call.1} parent=1 // pred_check
      _
    $region11: #{tpu_custom_call.1} parent=1 // pred_check_branch
      %35 = sbr.rel (0) target = $region13
    $region12: #{tpu_custom_call.1} parent=1 // pred_region
      %37 = dma.done [#allocation3], 8192
    $region13: #{tpu_custom_call.1} parent=1 // pred_fallthru
      _
    // Predicated region
    $region14: #{tpu_custom_call.1} parent=1 // pred_check
      _
    $region15: #{tpu_custom_call.1} parent=1 // pred_check_branch
      %39 = sbr.rel (0) target = $region17
    $region16: #{tpu_custom_call.1} parent=1 // pred_region
      %41 = dma.done [#allocation6], 64
    $region17: #{tpu_custom_call.1} parent=1 // pred_fallthru
      _
    %v42 = vld [vmem:[#allocation2] sm:$0xff]
    %v43 = vld [vmem:[#allocation2 + $0x8] sm:$0xff]
    %v44 = vld [vmem:[#allocation2 + $0x10] sm:$0xff]
    %v45 = vld [vmem:[#allocation2 + $0x18] sm:$0xff]
    %v46 = vld [vmem:[#allocation2 + $0x20] sm:$0xff]
    %v47 = vld [vmem:[#allocation2 + $0x28] sm:$0xff]
    %v48 = vld [vmem:[#allocation2 + $0x30] sm:$0xff]
    %v49 = vld [vmem:[#allocation2 + $0x38] sm:$0xff]
    %v50 = vld [vmem:[#allocation2 + $0x40] sm:$0xff]
    %v51 = vld [vmem:[#allocation2 + $0x48] sm:$0xff]
    %v52 = vld [vmem:[#allocation2 + $0x50] sm:$0xff]
    %v53 = vld [vmem:[#allocation2 + $0x58] sm:$0xff]
    %v54 = vld [vmem:[#allocation2 + $0x60] sm:$0xff]
    %v55 = vld [vmem:[#allocation2 + $0x68] sm:$0xff]
    %v56 = vld [vmem:[#allocation2 + $0x70] sm:$0xff]
    %v57 = vld [vmem:[#allocation2 + $0x78] sm:$0xff]
    %v58 = vld [vmem:[#allocation2 + $0x80] sm:$0xff]
    %v59 = vld [vmem:[#allocation2 + $0x88] sm:$0xff]
    %v60 = vld [vmem:[#allocation2 + $0x90] sm:$0xff]
    %v61 = vld [vmem:[#allocation2 + $0x98] sm:$0xff]
    %v62 = vld [vmem:[#allocation2 + $0xa0] sm:$0xff]
    %v63 = vld [vmem:[#allocation2 + $0xa8] sm:$0xff]
    %v64 = vld [vmem:[#allocation2 + $0xb0] sm:$0xff]
    %v65 = vld [vmem:[#allocation2 + $0xb8] sm:$0xff]
    %v66 = vld [vmem:[#allocation2 + $0xc0] sm:$0xff]
    %v67 = vld [vmem:[#allocation2 + $0xc8] sm:$0xff]
    %v68 = vld [vmem:[#allocation2 + $0xd0] sm:$0xff]
    %v69 = vld [vmem:[#allocation2 + $0xd8] sm:$0xff]
    %v70 = vld [vmem:[#allocation2 + $0xe0] sm:$0xff]
    %v71 = vld [vmem:[#allocation2 + $0xe8] sm:$0xff]
    %v72 = vld [vmem:[#allocation2 + $0xf0] sm:$0xff]
    %v73 = vld [vmem:[#allocation2 + $0xf8] sm:$0xff]
    %v74 = vld [vmem:[#allocation2 + $0x100] sm:$0xff]
    %v75 = vld [vmem:[#allocation2 + $0x108] sm:$0xff]
    %v76 = vld [vmem:[#allocation2 + $0x110] sm:$0xff]
    %v77 = vld [vmem:[#allocation2 + $0x118] sm:$0xff]
    %v78 = vld [vmem:[#allocation2 + $0x120] sm:$0xff]
    %v79 = vld [vmem:[#allocation2 + $0x128] sm:$0xff]
    %v80 = vld [vmem:[#allocation2 + $0x130] sm:$0xff]
    %v81 = vld [vmem:[#allocation2 + $0x138] sm:$0xff]
    %v82 = vld [vmem:[#allocation2 + $0x140] sm:$0xff]
    %v83 = vld [vmem:[#allocation2 + $0x148] sm:$0xff]
    %v84 = vld [vmem:[#allocation2 + $0x150] sm:$0xff]
    %v85 = vld [vmem:[#allocation2 + $0x158] sm:$0xff]
    %v86 = vld [vmem:[#allocation2 + $0x160] sm:$0xff]
    %v87 = vld [vmem:[#allocation2 + $0x168] sm:$0xff]
    %v88 = vld [vmem:[#allocation2 + $0x170] sm:$0xff]
    %v89 = vld [vmem:[#allocation2 + $0x178] sm:$0xff]
    %v90 = vld [vmem:[#allocation2 + $0x180] sm:$0xff]
    %v91 = vld [vmem:[#allocation2 + $0x188] sm:$0xff]
    %v92 = vld [vmem:[#allocation2 + $0x190] sm:$0xff]
    %v93 = vld [vmem:[#allocation2 + $0x198] sm:$0xff]
    %v94 = vld [vmem:[#allocation2 + $0x1a0] sm:$0xff]
    %v95 = vld [vmem:[#allocation2 + $0x1a8] sm:$0xff]
    %v96 = vld [vmem:[#allocation2 + $0x1b0] sm:$0xff]
    %v97 = vld [vmem:[#allocation2 + $0x1b8] sm:$0xff]
    %v98 = vld [vmem:[#allocation2 + $0x1c0] sm:$0xff]
    %v99 = vld [vmem:[#allocation2 + $0x1c8] sm:$0xff]
    %v100 = vld [vmem:[#allocation2 + $0x1d0] sm:$0xff]
    %v101 = vld [vmem:[#allocation2 + $0x1d8] sm:$0xff]
    %v102 = vld [vmem:[#allocation2 + $0x1e0] sm:$0xff]
    %v103 = vld [vmem:[#allocation2 + $0x1e8] sm:$0xff]
    %v104 = vld [vmem:[#allocation2 + $0x1f0] sm:$0xff]
    %v105 = vld [vmem:[#allocation2 + $0x1f8] sm:$0xff]
    %v106 = vmul.f32 %v42, %v42
    %v107 = vmul.f32 %v43, %v43
    %v108 = vmul.f32 %v44, %v44
    %v109 = vmul.f32 %v45, %v45
    %v110 = vmul.f32 %v46, %v46
    %v111 = vmul.f32 %v47, %v47
    %v112 = vmul.f32 %v48, %v48
    %v113 = vmul.f32 %v49, %v49
    %v114 = vmul.f32 %v50, %v50
    %v115 = vmul.f32 %v51, %v51
    %v116 = vmul.f32 %v52, %v52
    %v117 = vmul.f32 %v53, %v53
    %v118 = vmul.f32 %v54, %v54
    %v119 = vmul.f32 %v55, %v55
    %v120 = vmul.f32 %v56, %v56
    %v121 = vmul.f32 %v57, %v57
    %v122 = vmul.f32 %v58, %v58
    %v123 = vmul.f32 %v59, %v59
    %v124 = vmul.f32 %v60, %v60
    %v125 = vmul.f32 %v61, %v61
    %v126 = vmul.f32 %v62, %v62
    %v127 = vmul.f32 %v63, %v63
    %v128 = vmul.f32 %v64, %v64
    %v129 = vmul.f32 %v65, %v65
    %v130 = vmul.f32 %v66, %v66
    %v131 = vmul.f32 %v67, %v67
    %v132 = vmul.f32 %v68, %v68
    %v133 = vmul.f32 %v69, %v69
    %v134 = vmul.f32 %v70, %v70
    %v135 = vmul.f32 %v71, %v71
    %v136 = vmul.f32 %v72, %v72
    %v137 = vmul.f32 %v73, %v73
    %v138 = vmul.f32 %v74, %v74
    %v139 = vmul.f32 %v75, %v75
    %v140 = vmul.f32 %v76, %v76
    %v141 = vmul.f32 %v77, %v77
    %v142 = vmul.f32 %v78, %v78
    %v143 = vmul.f32 %v79, %v79
    %v144 = vmul.f32 %v80, %v80
    %v145 = vmul.f32 %v81, %v81
    %v146 = vmul.f32 %v82, %v82
    %v147 = vmul.f32 %v83, %v83
    %v148 = vmul.f32 %v84, %v84
    %v149 = vmul.f32 %v85, %v85
    %v150 = vmul.f32 %v86, %v86
    %v151 = vmul.f32 %v87, %v87
    %v152 = vmul.f32 %v88, %v88
    %v153 = vmul.f32 %v89, %v89
    %v154 = vmul.f32 %v90, %v90
    %v155 = vmul.f32 %v91, %v91
    %v156 = vmul.f32 %v92, %v92
    %v157 = vmul.f32 %v93, %v93
    %v158 = vmul.f32 %v94, %v94
    %v159 = vmul.f32 %v95, %v95
    %v160 = vmul.f32 %v96, %v96
    %v161 = vmul.f32 %v97, %v97
    %v162 = vmul.f32 %v98, %v98
    %v163 = vmul.f32 %v99, %v99
    %v164 = vmul.f32 %v100, %v100
    %v165 = vmul.f32 %v101, %v101
    %v166 = vmul.f32 %v102, %v102
    %v167 = vmul.f32 %v103, %v103
    %v168 = vmul.f32 %v104, %v104
    %v169 = vmul.f32 %v105, %v105
    %v170 = vadd.f32 %v106, %v107
    %v171 = vadd.f32 %v170, %v108
    %v172 = vadd.f32 %v171, %v109
    %173 = vadd.xlane.f32.xlu0 %v172
    %v174 = vpop.xlane.xlu0 %173
    %v175 = vadd.f32 %v110, %v111
    %v176 = vadd.f32 %v175, %v112
    %v177 = vadd.f32 %v176, %v113
    %178 = vadd.xlane.f32.xlu0 %v177
    %v179 = vpop.xlane.xlu0 %178
    %v180 = vadd.f32 %v114, %v115
    %v181 = vadd.f32 %v180, %v116
    %v182 = vadd.f32 %v181, %v117
    %183 = vadd.xlane.f32.xlu0 %v182
    %v184 = vpop.xlane.xlu0 %183
    %v185 = vadd.f32 %v118, %v119
    %v186 = vadd.f32 %v185, %v120
    %v187 = vadd.f32 %v186, %v121
    %188 = vadd.xlane.f32.xlu0 %v187
    %v189 = vpop.xlane.xlu0 %188
    %v190 = vadd.f32 %v122, %v123
    %v191 = vadd.f32 %v190, %v124
    %v192 = vadd.f32 %v191, %v125
    %193 = vadd.xlane.f32.xlu0 %v192
    %v194 = vpop.xlane.xlu0 %193
    %v195 = vadd.f32 %v126, %v127
    %v196 = vadd.f32 %v195, %v128
    %v197 = vadd.f32 %v196, %v129
    %198 = vadd.xlane.f32.xlu0 %v197
    %v199 = vpop.xlane.xlu0 %198
    %v200 = vadd.f32 %v130, %v131
    %v201 = vadd.f32 %v200, %v132
    %v202 = vadd.f32 %v201, %v133
    %203 = vadd.xlane.f32.xlu0 %v202
    %v204 = vpop.xlane.xlu0 %203
    %v205 = vadd.f32 %v134, %v135
    %v206 = vadd.f32 %v205, %v136
    %v207 = vadd.f32 %v206, %v137
    %208 = vadd.xlane.f32.xlu0 %v207
    %v209 = vpop.xlane.xlu0 %208
    %v210 = vadd.f32 %v138, %v139
    %v211 = vadd.f32 %v210, %v140
    %v212 = vadd.f32 %v211, %v141
    %213 = vadd.xlane.f32.xlu0 %v212
    %v214 = vpop.xlane.xlu0 %213
    %v215 = vadd.f32 %v142, %v143
    %v216 = vadd.f32 %v215, %v144
    %v217 = vadd.f32 %v216, %v145
    %218 = vadd.xlane.f32.xlu0 %v217
    %v219 = vpop.xlane.xlu0 %218
    %v220 = vadd.f32 %v146, %v147
    %v221 = vadd.f32 %v220, %v148
    %v222 = vadd.f32 %v221, %v149
    %223 = vadd.xlane.f32.xlu0 %v222
    %v224 = vpop.xlane.xlu0 %223
    %v225 = vadd.f32 %v150, %v151
    %v226 = vadd.f32 %v225, %v152
    %v227 = vadd.f32 %v226, %v153
    %228 = vadd.xlane.f32.xlu0 %v227
    %v229 = vpop.xlane.xlu0 %228
    %v230 = vadd.f32 %v154, %v155
    %v231 = vadd.f32 %v230, %v156
    %v232 = vadd.f32 %v231, %v157
    %233 = vadd.xlane.f32.xlu0 %v232
    %v234 = vpop.xlane.xlu0 %233
    %v235 = vadd.f32 %v158, %v159
    %v236 = vadd.f32 %v235, %v160
    %v237 = vadd.f32 %v236, %v161
    %238 = vadd.xlane.f32.xlu0 %v237
    %v239 = vpop.xlane.xlu0 %238
    %v240 = vadd.f32 %v162, %v163
    %v241 = vadd.f32 %v240, %v164
    %v242 = vadd.f32 %v241, %v165
    %243 = vadd.xlane.f32.xlu0 %v242
    %v244 = vpop.xlane.xlu0 %243
    %v245 = vadd.f32 %v166, %v167
    %v246 = vadd.f32 %v245, %v168
    %v247 = vadd.f32 %v246, %v169
    %248 = vadd.xlane.f32.xlu0 %v247
    %v249 = vpop.xlane.xlu0 %248
    %v250 = vrcp.pop 512.0
    %v251 = vmul.f32 512.0, %v250
    %v252 = vsub.f32 1.0, %v251
    %v253 = vmul.f32 %v250, %v252
    %v254 = vadd.f32 %v250, %v253
    %vm255 = vweird.f32 %v250
    %v256 = vsel %vm255, %v250, %v254
    %v257 = vmul.f32 %v174, %v256
    %v258 = vmul.f32 %v179, %v256
    %v259 = vmul.f32 %v184, %v256
    %v260 = vmul.f32 %v189, %v256
    %v261 = vmul.f32 %v194, %v256
    %v262 = vmul.f32 %v199, %v256
    %v263 = vmul.f32 %v204, %v256
    %v264 = vmul.f32 %v209, %v256
    %v265 = vmul.f32 %v214, %v256
    %v266 = vmul.f32 %v219, %v256
    %v267 = vmul.f32 %v224, %v256
    %v268 = vmul.f32 %v229, %v256
    %v269 = vmul.f32 %v234, %v256
    %v270 = vmul.f32 %v239, %v256
    %v271 = vmul.f32 %v244, %v256
    %v272 = vmul.f32 %v249, %v256
    %v273 = vadd.f32 %v257, 1e-05
    %v274 = vadd.f32 %v258, 1e-05
    %v275 = vadd.f32 %v259, 1e-05
    %v276 = vadd.f32 %v260, 1e-05
    %v277 = vadd.f32 %v261, 1e-05
    %v278 = vadd.f32 %v262, 1e-05
    %v279 = vadd.f32 %v263, 1e-05
    %v280 = vadd.f32 %v264, 1e-05
    %v281 = vadd.f32 %v265, 1e-05
    %v282 = vadd.f32 %v266, 1e-05
    %v283 = vadd.f32 %v267, 1e-05
    %v284 = vadd.f32 %v268, 1e-05
    %v285 = vadd.f32 %v269, 1e-05
    %v286 = vadd.f32 %v270, 1e-05
    %v287 = vadd.f32 %v271, 1e-05
    %v288 = vadd.f32 %v272, 1e-05
    %v289 = vrsqrt.pop %v273
    %v290 = vmul.f32 %v289, %v273
    %v291 = vmul.f32 %v290, %v289
    %v292 = vmul.f32 0.5, %v291
    %v293 = vsub.f32 1.5, %v292
    %v294 = vmul.f32 %v289, %v293
    %vm295 = vweird.f32 %v273
    %vm296 = vweird.f32 %v289
    %vm297 = vmor %vm295, %vm296
    %v298 = vsel %vm297, %v289, %v294
    %v299 = vrsqrt.pop %v274
    %v300 = vmul.f32 %v299, %v274
    %v301 = vmul.f32 %v300, %v299
    %v302 = vmul.f32 0.5, %v301
    %v303 = vsub.f32 1.5, %v302
    %v304 = vmul.f32 %v299, %v303
    %vm305 = vweird.f32 %v274
    %vm306 = vweird.f32 %v299
    %vm307 = vmor %vm305, %vm306
    %v308 = vsel %vm307, %v299, %v304
    %v309 = vrsqrt.pop %v275
    %v310 = vmul.f32 %v309, %v275
    %v311 = vmul.f32 %v310, %v309
    %v312 = vmul.f32 0.5, %v311
    %v313 = vsub.f32 1.5, %v312
    %v314 = vmul.f32 %v309, %v313
    %vm315 = vweird.f32 %v275
    %vm316 = vweird.f32 %v309
    %vm317 = vmor %vm315, %vm316
    %v318 = vsel %vm317, %v309, %v314
    %v319 = vrsqrt.pop %v276
    %v320 = vmul.f32 %v319, %v276
    %v321 = vmul.f32 %v320, %v319
    %v322 = vmul.f32 0.5, %v321
    %v323 = vsub.f32 1.5, %v322
    %v324 = vmul.f32 %v319, %v323
    %vm325 = vweird.f32 %v276
    %vm326 = vweird.f32 %v319
    %vm327 = vmor %vm325, %vm326
    %v328 = vsel %vm327, %v319, %v324
    %v329 = vrsqrt.pop %v277
    %v330 = vmul.f32 %v329, %v277
    %v331 = vmul.f32 %v330, %v329
    %v332 = vmul.f32 0.5, %v331
    %v333 = vsub.f32 1.5, %v332
    %v334 = vmul.f32 %v329, %v333
    %vm335 = vweird.f32 %v277
    %vm336 = vweird.f32 %v329
    %vm337 = vmor %vm335, %vm336
    %v338 = vsel %vm337, %v329, %v334
    %v339 = vrsqrt.pop %v278
    %v340 = vmul.f32 %v339, %v278
    %v341 = vmul.f32 %v340, %v339
    %v342 = vmul.f32 0.5, %v341
    %v343 = vsub.f32 1.5, %v342
    %v344 = vmul.f32 %v339, %v343
    %vm345 = vweird.f32 %v278
    %vm346 = vweird.f32 %v339
    %vm347 = vmor %vm345, %vm346
    %v348 = vsel %vm347, %v339, %v344
    %v349 = vrsqrt.pop %v279
    %v350 = vmul.f32 %v349, %v279
    %v351 = vmul.f32 %v350, %v349
    %v352 = vmul.f32 0.5, %v351
    %v353 = vsub.f32 1.5, %v352
    %v354 = vmul.f32 %v349, %v353
    %vm355 = vweird.f32 %v279
    %vm356 = vweird.f32 %v349
    %vm357 = vmor %vm355, %vm356
    %v358 = vsel %vm357, %v349, %v354
    %v359 = vrsqrt.pop %v280
    %v360 = vmul.f32 %v359, %v280
    %v361 = vmul.f32 %v360, %v359
    %v362 = vmul.f32 0.5, %v361
    %v363 = vsub.f32 1.5, %v362
    %v364 = vmul.f32 %v359, %v363
    %vm365 = vweird.f32 %v280
    %vm366 = vweird.f32 %v359
    %vm367 = vmor %vm365, %vm366
    %v368 = vsel %vm367, %v359, %v364
    %v369 = vrsqrt.pop %v281
    %v370 = vmul.f32 %v369, %v281
    %v371 = vmul.f32 %v370, %v369
    %v372 = vmul.f32 0.5, %v371
    %v373 = vsub.f32 1.5, %v372
    %v374 = vmul.f32 %v369, %v373
    %vm375 = vweird.f32 %v281
    %vm376 = vweird.f32 %v369
    %vm377 = vmor %vm375, %vm376
    %v378 = vsel %vm377, %v369, %v374
    %v379 = vrsqrt.pop %v282
    %v380 = vmul.f32 %v379, %v282
    %v381 = vmul.f32 %v380, %v379
    %v382 = vmul.f32 0.5, %v381
    %v383 = vsub.f32 1.5, %v382
    %v384 = vmul.f32 %v379, %v383
    %vm385 = vweird.f32 %v282
    %vm386 = vweird.f32 %v379
    %vm387 = vmor %vm385, %vm386
    %v388 = vsel %vm387, %v379, %v384
    %v389 = vrsqrt.pop %v283
    %v390 = vmul.f32 %v389, %v283
    %v391 = vmul.f32 %v390, %v389
    %v392 = vmul.f32 0.5, %v391
    %v393 = vsub.f32 1.5, %v392
    %v394 = vmul.f32 %v389, %v393
    %vm395 = vweird.f32 %v283
    %vm396 = vweird.f32 %v389
    %vm397 = vmor %vm395, %vm396
    %v398 = vsel %vm397, %v389, %v394
    %v399 = vrsqrt.pop %v284
    %v400 = vmul.f32 %v399, %v284
    %v401 = vmul.f32 %v400, %v399
    %v402 = vmul.f32 0.5, %v401
    %v403 = vsub.f32 1.5, %v402
    %v404 = vmul.f32 %v399, %v403
    %vm405 = vweird.f32 %v284
    %vm406 = vweird.f32 %v399
    %vm407 = vmor %vm405, %vm406
    %v408 = vsel %vm407, %v399, %v404
    %v409 = vrsqrt.pop %v285
    %v410 = vmul.f32 %v409, %v285
    %v411 = vmul.f32 %v410, %v409
    %v412 = vmul.f32 0.5, %v411
    %v413 = vsub.f32 1.5, %v412
    %v414 = vmul.f32 %v409, %v413
    %vm415 = vweird.f32 %v285
    %vm416 = vweird.f32 %v409
    %vm417 = vmor %vm415, %vm416
    %v418 = vsel %vm417, %v409, %v414
    %v419 = vrsqrt.pop %v286
    %v420 = vmul.f32 %v419, %v286
    %v421 = vmul.f32 %v420, %v419
    %v422 = vmul.f32 0.5, %v421
    %v423 = vsub.f32 1.5, %v422
    %v424 = vmul.f32 %v419, %v423
    %vm425 = vweird.f32 %v286
    %vm426 = vweird.f32 %v419
    %vm427 = vmor %vm425, %vm426
    %v428 = vsel %vm427, %v419, %v424
    %v429 = vrsqrt.pop %v287
    %v430 = vmul.f32 %v429, %v287
    %v431 = vmul.f32 %v430, %v429
    %v432 = vmul.f32 0.5, %v431
    %v433 = vsub.f32 1.5, %v432
    %v434 = vmul.f32 %v429, %v433
    %vm435 = vweird.f32 %v287
    %vm436 = vweird.f32 %v429
    %vm437 = vmor %vm435, %vm436
    %v438 = vsel %vm437, %v429, %v434
    %v439 = vrsqrt.pop %v288
    %v440 = vmul.f32 %v439, %v288
    %v441 = vmul.f32 %v440, %v439
    %v442 = vmul.f32 0.5, %v441
    %v443 = vsub.f32 1.5, %v442
    %v444 = vmul.f32 %v439, %v443
    %vm445 = vweird.f32 %v288
    %vm446 = vweird.f32 %v439
    %vm447 = vmor %vm445, %vm446
    %v448 = vsel %vm447, %v439, %v444
    %v449 = vmul.f32 %v42, %v298
    %v450 = vmul.f32 %v43, %v298
    %v451 = vmul.f32 %v44, %v298
    %v452 = vmul.f32 %v45, %v298
    %v453 = vmul.f32 %v46, %v308
    %v454 = vmul.f32 %v47, %v308
    %v455 = vmul.f32 %v48, %v308
    %v456 = vmul.f32 %v49, %v308
    %v457 = vmul.f32 %v50, %v318
    %v458 = vmul.f32 %v51, %v318
    %v459 = vmul.f32 %v52, %v318
    %v460 = vmul.f32 %v53, %v318
    %v461 = vmul.f32 %v54, %v328
    %v462 = vmul.f32 %v55, %v328
    %v463 = vmul.f32 %v56, %v328
    %v464 = vmul.f32 %v57, %v328
    %v465 = vmul.f32 %v58, %v338
    %v466 = vmul.f32 %v59, %v338
    %v467 = vmul.f32 %v60, %v338
    %v468 = vmul.f32 %v61, %v338
    %v469 = vmul.f32 %v62, %v348
    %v470 = vmul.f32 %v63, %v348
    %v471 = vmul.f32 %v64, %v348
    %v472 = vmul.f32 %v65, %v348
    %v473 = vmul.f32 %v66, %v358
    %v474 = vmul.f32 %v67, %v358
    %v475 = vmul.f32 %v68, %v358
    %v476 = vmul.f32 %v69, %v358
    %v477 = vmul.f32 %v70, %v368
    %v478 = vmul.f32 %v71, %v368
    %v479 = vmul.f32 %v72, %v368
    %v480 = vmul.f32 %v73, %v368
    %v481 = vmul.f32 %v74, %v378
    %v482 = vmul.f32 %v75, %v378
    %v483 = vmul.f32 %v76, %v378
    %v484 = vmul.f32 %v77, %v378
    %v485 = vmul.f32 %v78, %v388
    %v486 = vmul.f32 %v79, %v388
    %v487 = vmul.f32 %v80, %v388
    %v488 = vmul.f32 %v81, %v388
    %v489 = vmul.f32 %v82, %v398
    %v490 = vmul.f32 %v83, %v398
    %v491 = vmul.f32 %v84, %v398
    %v492 = vmul.f32 %v85, %v398
    %v493 = vmul.f32 %v86, %v408
    %v494 = vmul.f32 %v87, %v408
    %v495 = vmul.f32 %v88, %v408
    %v496 = vmul.f32 %v89, %v408
    %v497 = vmul.f32 %v90, %v418
    %v498 = vmul.f32 %v91, %v418
    %v499 = vmul.f32 %v92, %v418
    %v500 = vmul.f32 %v93, %v418
    %v501 = vmul.f32 %v94, %v428
    %v502 = vmul.f32 %v95, %v428
    %v503 = vmul.f32 %v96, %v428
    %v504 = vmul.f32 %v97, %v428
    %v505 = vmul.f32 %v98, %v438
    %v506 = vmul.f32 %v99, %v438
    %v507 = vmul.f32 %v100, %v438
    %v508 = vmul.f32 %v101, %v438
    %v509 = vmul.f32 %v102, %v448
    %v510 = vmul.f32 %v103, %v448
    %v511 = vmul.f32 %v104, %v448
    %v512 = vmul.f32 %v105, %v448
    %v513 = vld [vmem:[#allocation5] sm:$0xf]
    %v515 = vperm.slane %v513, 0
    %v516 = vperm.slane %v513, 1
    %v517 = vperm.slane %v513, 2
    %v518 = vperm.slane %v513, 3
    %v523 = vmul.f32 %v515, %v449
    %v524 = vmul.f32 %v516, %v450
    %v525 = vmul.f32 %v517, %v451
    %v526 = vmul.f32 %v518, %v452
    %v527 = vmul.f32 %v515, %v453
    %v528 = vmul.f32 %v516, %v454
    %v529 = vmul.f32 %v517, %v455
    %v530 = vmul.f32 %v518, %v456
    %v531 = vmul.f32 %v515, %v457
    %v532 = vmul.f32 %v516, %v458
    %v533 = vmul.f32 %v517, %v459
    %v534 = vmul.f32 %v518, %v460
    %v535 = vmul.f32 %v515, %v461
    %v536 = vmul.f32 %v516, %v462
    %v537 = vmul.f32 %v517, %v463
    %v538 = vmul.f32 %v518, %v464
    %v539 = vmul.f32 %v515, %v465
    %v540 = vmul.f32 %v516, %v466
    %v541 = vmul.f32 %v517, %v467
    %v542 = vmul.f32 %v518, %v468
    %v543 = vmul.f32 %v515, %v469
    %v544 = vmul.f32 %v516, %v470
    %v545 = vmul.f32 %v517, %v471
    %v546 = vmul.f32 %v518, %v472
    %v547 = vmul.f32 %v515, %v473
    %v548 = vmul.f32 %v516, %v474
    %v549 = vmul.f32 %v517, %v475
    %v550 = vmul.f32 %v518, %v476
    %v551 = vmul.f32 %v515, %v477
    %v552 = vmul.f32 %v516, %v478
    %v553 = vmul.f32 %v517, %v479
    %v554 = vmul.f32 %v518, %v480
    %v555 = vmul.f32 %v515, %v481
    %v556 = vmul.f32 %v516, %v482
    %v557 = vmul.f32 %v517, %v483
    %v558 = vmul.f32 %v518, %v484
    %v559 = vmul.f32 %v515, %v485
    %v560 = vmul.f32 %v516, %v486
    %v561 = vmul.f32 %v517, %v487
    %v562 = vmul.f32 %v518, %v488
    %v563 = vmul.f32 %v515, %v489
    %v564 = vmul.f32 %v516, %v490
    %v565 = vmul.f32 %v517, %v491
    %v566 = vmul.f32 %v518, %v492
    %v567 = vmul.f32 %v515, %v493
    %v568 = vmul.f32 %v516, %v494
    %v569 = vmul.f32 %v517, %v495
    %v570 = vmul.f32 %v518, %v496
    %v571 = vmul.f32 %v515, %v497
    %v572 = vmul.f32 %v516, %v498
    %v573 = vmul.f32 %v517, %v499
    %v574 = vmul.f32 %v518, %v500
    %v575 = vmul.f32 %v515, %v501
    %v576 = vmul.f32 %v516, %v502
    %v577 = vmul.f32 %v517, %v503
    %v578 = vmul.f32 %v518, %v504
    %v579 = vmul.f32 %v515, %v505
    %v580 = vmul.f32 %v516, %v506
    %v581 = vmul.f32 %v517, %v507
    %v582 = vmul.f32 %v518, %v508
    %v583 = vmul.f32 %v515, %v509
    %v584 = vmul.f32 %v516, %v510
    %v585 = vmul.f32 %v517, %v511
    %v586 = vmul.f32 %v518, %v512
    %587 = vst [vmem:[#allocation7] sm:$0xff] %v523
    %588 = vst [vmem:[#allocation7 + $0x8] sm:$0xff] %v524
    %589 = vst [vmem:[#allocation7 + $0x10] sm:$0xff] %v525
    %590 = vst [vmem:[#allocation7 + $0x18] sm:$0xff] %v526
    %591 = vst [vmem:[#allocation7 + $0x20] sm:$0xff] %v527
    %592 = vst [vmem:[#allocation7 + $0x28] sm:$0xff] %v528
    %593 = vst [vmem:[#allocation7 + $0x30] sm:$0xff] %v529
    %594 = vst [vmem:[#allocation7 + $0x38] sm:$0xff] %v530
    %595 = vst [vmem:[#allocation7 + $0x40] sm:$0xff] %v531
    %596 = vst [vmem:[#allocation7 + $0x48] sm:$0xff] %v532
    %597 = vst [vmem:[#allocation7 + $0x50] sm:$0xff] %v533
    %598 = vst [vmem:[#allocation7 + $0x58] sm:$0xff] %v534
    %599 = vst [vmem:[#allocation7 + $0x60] sm:$0xff] %v535
    %600 = vst [vmem:[#allocation7 + $0x68] sm:$0xff] %v536
    %601 = vst [vmem:[#allocation7 + $0x70] sm:$0xff] %v537
    %602 = vst [vmem:[#allocation7 + $0x78] sm:$0xff] %v538
    %603 = vst [vmem:[#allocation7 + $0x80] sm:$0xff] %v539
    %604 = vst [vmem:[#allocation7 + $0x88] sm:$0xff] %v540
    %605 = vst [vmem:[#allocation7 + $0x90] sm:$0xff] %v541
    %606 = vst [vmem:[#allocation7 + $0x98] sm:$0xff] %v542
    %607 = vst [vmem:[#allocation7 + $0xa0] sm:$0xff] %v543
    %608 = vst [vmem:[#allocation7 + $0xa8] sm:$0xff] %v544
    %609 = vst [vmem:[#allocation7 + $0xb0] sm:$0xff] %v545
    %610 = vst [vmem:[#allocation7 + $0xb8] sm:$0xff] %v546
    %611 = vst [vmem:[#allocation7 + $0xc0] sm:$0xff] %v547
    %612 = vst [vmem:[#allocation7 + $0xc8] sm:$0xff] %v548
    %613 = vst [vmem:[#allocation7 + $0xd0] sm:$0xff] %v549
    %614 = vst [vmem:[#allocation7 + $0xd8] sm:$0xff] %v550
    %615 = vst [vmem:[#allocation7 + $0xe0] sm:$0xff] %v551
    %616 = vst [vmem:[#allocation7 + $0xe8] sm:$0xff] %v552
    %617 = vst [vmem:[#allocation7 + $0xf0] sm:$0xff] %v553
    %618 = vst [vmem:[#allocation7 + $0xf8] sm:$0xff] %v554
    %619 = vst [vmem:[#allocation7 + $0x100] sm:$0xff] %v555
    %620 = vst [vmem:[#allocation7 + $0x108] sm:$0xff] %v556
    %621 = vst [vmem:[#allocation7 + $0x110] sm:$0xff] %v557
    %622 = vst [vmem:[#allocation7 + $0x118] sm:$0xff] %v558
    %623 = vst [vmem:[#allocation7 + $0x120] sm:$0xff] %v559
    %624 = vst [vmem:[#allocation7 + $0x128] sm:$0xff] %v560
    %625 = vst [vmem:[#allocation7 + $0x130] sm:$0xff] %v561
    %626 = vst [vmem:[#allocation7 + $0x138] sm:$0xff] %v562
    %627 = vst [vmem:[#allocation7 + $0x140] sm:$0xff] %v563
    %628 = vst [vmem:[#allocation7 + $0x148] sm:$0xff] %v564
    %629 = vst [vmem:[#allocation7 + $0x150] sm:$0xff] %v565
    %630 = vst [vmem:[#allocation7 + $0x158] sm:$0xff] %v566
    %631 = vst [vmem:[#allocation7 + $0x160] sm:$0xff] %v567
    %632 = vst [vmem:[#allocation7 + $0x168] sm:$0xff] %v568
    %633 = vst [vmem:[#allocation7 + $0x170] sm:$0xff] %v569
    %634 = vst [vmem:[#allocation7 + $0x178] sm:$0xff] %v570
    %635 = vst [vmem:[#allocation7 + $0x180] sm:$0xff] %v571
    %636 = vst [vmem:[#allocation7 + $0x188] sm:$0xff] %v572
    %637 = vst [vmem:[#allocation7 + $0x190] sm:$0xff] %v573
    %638 = vst [vmem:[#allocation7 + $0x198] sm:$0xff] %v574
    %639 = vst [vmem:[#allocation7 + $0x1a0] sm:$0xff] %v575
    %640 = vst [vmem:[#allocation7 + $0x1a8] sm:$0xff] %v576
    %641 = vst [vmem:[#allocation7 + $0x1b0] sm:$0xff] %v577
    %642 = vst [vmem:[#allocation7 + $0x1b8] sm:$0xff] %v578
    %643 = vst [vmem:[#allocation7 + $0x1c0] sm:$0xff] %v579
    %644 = vst [vmem:[#allocation7 + $0x1c8] sm:$0xff] %v580
    %645 = vst [vmem:[#allocation7 + $0x1d0] sm:$0xff] %v581
    %646 = vst [vmem:[#allocation7 + $0x1d8] sm:$0xff] %v582
    %647 = vst [vmem:[#allocation7 + $0x1e0] sm:$0xff] %v583
    %648 = vst [vmem:[#allocation7 + $0x1e8] sm:$0xff] %v584
    %649 = vst [vmem:[#allocation7 + $0x1f0] sm:$0xff] %v585
    %650 = vst [vmem:[#allocation7 + $0x1f8] sm:$0xff] %v586
    // Predicated region
    $region18: #{tpu_custom_call.1} parent=1 // pred_check
      _
    $region19: #{tpu_custom_call.1} parent=1 // pred_check_branch
      %652 = sbr.rel (0) target = $region21
    $region20: #{tpu_custom_call.1} parent=1 // pred_region
      %654 = vsyncadd [#allocation4], 0
      %s655 = sshll.u32 [#allocation7], 4
      %s656 = int_to_ptr.vmem [resolvable:$true] %s655
      %s657 = sshll.u32 %s2, 4
      %s658 = int_to_ptr.hbm [resolvable:$true] %s657
      %663 = dma.vmem_to_hbm [thread:$0]  %s656, 8192, %s658, [#allocation4], 512, 512, 32
    $region21: #{tpu_custom_call.1} parent=1 // pred_fallthru
      _
    // Predicated region
    $region22: #{tpu_custom_call.1} parent=1 // pred_check
      _
    $region23: #{tpu_custom_call.1} parent=1 // pred_check_branch
      %665 = sbr.rel (0) target = $region25
    $region24: #{tpu_custom_call.1} parent=1 // pred_region
      %667 = dma.done [#allocation4], 8192
    $region25: #{tpu_custom_call.1} parent=1 // pred_fallthru
      _
    %668 = vsyncpa [#allocation3], 1
    %669 = vsyncpa [#allocation6], 1
    %670 = vsyncpa [#allocation4], 1

</llo_original>
